<compile_context>
chip_gen: v6e
topology: v6e:2x2x1
jax: 0.10.0
libtpu: 0.0.40
codegen_flags: <defaults>
</compile_context>

<pallas_src>
import jax
import jax.numpy as jnp
from jax.experimental import pallas as pl
from jax.experimental.pallas import tpu as pltpu


def _round_up(x, m):
    return -(-x // m) * m


def _vmem_budgets():
    """(vmem_limit_bytes, tile_budget_bytes), generation-aware with safe fallback."""
    try:
        phys = getattr(pltpu.get_tpu_info(), "vmem_capacity_bytes", 64 * 1024 * 1024)
    except Exception:  # pragma: no cover - e.g. interpret mode / no TPU visible
        phys = 64 * 1024 * 1024
    if phys >= 128 * 1024 * 1024:          # v5e / v6e class parts
        return 64 * 1024 * 1024, 48 * 1024 * 1024
    return 32 * 1024 * 1024, 24 * 1024 * 1024   # v7x class (64 MiB physical)


def _pick_batch_tile(batch, padded_row_bytes, tile_budget, max_rows_cap=None):
    """Largest multiple-of-8 row count whose (double-buffered, lane-padded) input
    tiles fit in `tile_budget`; whole batch if it already fits (full-dim block)."""
    max_rows = max(8, (tile_budget // max(1, padded_row_bytes)) // 8 * 8)
    if max_rows_cap is not None:
        max_rows = max(8, min(max_rows, (max_rows_cap // 8) * 8))
    if batch <= max_rows:
        return batch                      # single whole-batch tile (block == full dim)
    return max_rows


def importance_regulated_loss(outputs, targets, router_1, router_2,
                              w_1=0.1, w_2=0.1, *, max_batch_tile=None):
    """Fused Pallas implementation of ImportanceRegulatedLoss.forward (MSE base loss).

    Precondition: experts E >= 2 (E == 1 gives the same inf/nan as torch.std unbiased).
    """
    if outputs.shape != targets.shape:
        raise ValueError("outputs/targets shape mismatch")
    if router_1.shape != router_2.shape:
        raise ValueError("router_1/router_2 shape mismatch")
    if router_1.shape[0] != outputs.shape[0]:
        raise ValueError("routers must share the batch/token axis (dim 0) with outputs")

    B, F = outputs.shape
    _, E = router_1.shape

    # ---- tiled-layout-aware VMEM accounting (lane padding to 128, x2 double-buffer) ----
    pad_F = _round_up(F, 128)
    pad_E = _round_up(E, 128)
    padded_row_bytes = 2 * (2 * pad_F * outputs.dtype.itemsize     # outputs + targets
                            + 2 * pad_E * router_1.dtype.itemsize)  # router_1 + router_2
    vmem_limit, tile_budget = _vmem_budgets()

    TB = _pick_batch_tile(B, padded_row_bytes, tile_budget, max_rows_cap=max_batch_tile)
    n_tiles = pl.cdiv(B, TB)
    has_tail = (B % TB) != 0
    NC = 2 if n_tiles >= 2 else 1          # megacore split whenever >= 2 tiles
    NT = pl.cdiv(n_tiles, NC)

    def _row_map(c, t):
        # Clamp: the second core may have one trailing iteration past the last real
        # tile (odd tile counts); map it onto the last tile and skip it in-kernel.
        return (jnp.minimum(c * NT + t, n_tiles - 1), 0)

    def kernel(out_ref, tgt_ref, r1_ref, r2_ref,
               sq_out, s1_out, s2_out,
               sq_acc, s1_acc, s2_acc):
        c = pl.program_id(0)
        t = pl.program_id(1)
        tile_idx = c * NT + t

        @pl.when(t == 0)
        def _init():
            sq_acc[...] = jnp.zeros_like(sq_acc)
            s1_acc[...] = jnp.zeros_like(s1_acc)
            s2_acc[...] = jnp.zeros_like(s2_acc)

        @pl.when(tile_idx < n_tiles)          # skip the clamped duplicate tail iteration
        def _accumulate():
            o = out_ref[...].astype(jnp.float32)
            g = tgt_ref[...].astype(jnp.float32)
            r1 = r1_ref[...].astype(jnp.float32)
            r2 = r2_ref[...].astype(jnp.float32)
            d = o - g
            if has_tail:
                rows = jax.lax.broadcasted_iota(jnp.int32, (TB, 1), 0)
                valid = (tile_idx * TB + rows) < B
                d = jnp.where(valid, d, 0.0)
                r1 = jnp.where(valid, r1, 0.0)
                r2 = jnp.where(valid, r2, 0.0)
            # f32 VPU adds into VMEM scratch; per-tile reduces are tiny vs HBM traffic.
            sq_acc[...] += jnp.sum(d * d)
            s1_acc[...] += jnp.sum(r1, axis=0, keepdims=True)
            s2_acc[...] += jnp.sum(r2, axis=0, keepdims=True)

        @pl.when(t == NT - 1)                 # single store per core, not per tile
        def _store():
            sq_out[...] = sq_acc[...]
            s1_out[...] = s1_acc[...]
            s2_out[...] = s2_acc[...]

    in_specs = [
        pl.BlockSpec((TB, F), _row_map),     # outputs
        pl.BlockSpec((TB, F), _row_map),     # targets
        pl.BlockSpec((TB, E), _row_map),     # router_1
        pl.BlockSpec((TB, E), _row_map),     # router_2
    ]
    out_shape = (
        jax.ShapeDtypeStruct((NC, 1, 1), jnp.float32),   # per-core sum of squared error
        jax.ShapeDtypeStruct((NC, 1, E), jnp.float32),   # per-core router_1 column sums
        jax.ShapeDtypeStruct((NC, 1, E), jnp.float32),   # per-core router_2 column sums
    )
    out_specs = (
        pl.BlockSpec((None, 1, 1), lambda c, t: (c, 0, 0)),
        pl.BlockSpec((None, 1, E), lambda c, t: (c, 0, 0)),
        pl.BlockSpec((None, 1, E), lambda c, t: (c, 0, 0)),
    )
    scratch_shapes = [
        pltpu.VMEM((1, 1), jnp.float32),
        pltpu.VMEM((1, E), jnp.float32),
        pltpu.VMEM((1, E), jnp.float32),
    ]

    bytes_accessed = (2 * B * pad_F * outputs.dtype.itemsize     # outputs + targets reads
                      + 2 * B * pad_E * router_1.dtype.itemsize  # router reads
                      + NC * (1 + 2 * E) * 4)                    # partial-sum writes
    cost = pl.CostEstimate(flops=3 * B * F + 2 * B * E,
                           transcendentals=0,
                           bytes_accessed=bytes_accessed)

    psq, ps1, ps2 = pl.pallas_call(
        kernel,
        grid=(NC, NT),
        in_specs=in_specs,
        out_specs=out_specs,
        out_shape=out_shape,
        scratch_shapes=scratch_shapes,
        compiler_params=pltpu.CompilerParams(
            dimension_semantics=("parallel", "arbitrary"),
            vmem_limit_bytes=vmem_limit,
        ),
        cost_estimate=cost,
    )(outputs, targets, router_1, router_2)

    # ---- tiny O(E) epilogue in plain JAX: combine per-core partials, std/cv, weights ----
    b_loss = jnp.sum(psq) / jnp.float32(B * F)

    def _cv_sq(partials):
        s = jnp.sum(partials, axis=(0, 1))                 # (E,) per-expert totals
        m = jnp.mean(s)
        # torch.std default: unbiased (divide by E-1). E == 1 -> inf/nan, like torch.
        var = jnp.sum((s - m) ** 2) / jnp.float32(E - 1)
        denom = m + jnp.float32(1e-8)
        return var / (denom * denom)                       # == (std / denom) ** 2

    return (b_loss
            + jnp.float32(w_1) * _cv_sq(ps1)
            + jnp.float32(w_2) * _cv_sq(ps2))


def _reference(outputs, targets, router_1, router_2, w_1=0.1, w_2=0.1):
    # Pure-JAX reference mirroring the PyTorch forward.
    b_loss = jnp.mean((outputs - targets) ** 2)

    def cv(r):
        s = jnp.sum(r, axis=0)
        return jnp.std(s, ddof=1) / (jnp.mean(s) + 1e-8)

    return b_loss + w_1 * cv(router_1) ** 2 + w_2 * cv(router_2) ** 2


if __name__ == "__main__":
    # ---- case 1: small shapes matching the module's toy usage (single-tile grid) ----
    k_out, k_tgt, k_r1, k_r2 = jax.random.split(jax.random.PRNGKey(0), 4)
    batch, feat, experts = 8, 32, 8
    outputs = jax.random.normal(k_out, (batch, feat), dtype=jnp.float32)
    targets = jax.random.normal(k_tgt, (batch, feat), dtype=jnp.float32)
    router_1 = jax.nn.softmax(jax.random.normal(k_r1, (batch, experts)), axis=-1)
    router_2 = jax.nn.softmax(jax.random.normal(k_r2, (batch, experts)), axis=-1)

    loss = importance_regulated_loss(outputs, targets, router_1, router_2)
    loss = jax.block_until_ready(loss)
    ref = _reference(outputs, targets, router_1, router_2)
    assert jnp.allclose(loss, ref, rtol=1e-5, atol=1e-5), (loss, ref)

    # ---- case 2: odd tile count + ragged tail -> exercises megacore split, the
    #      clamped/skipped trailing iteration, and the zero-masked partial tile ----
    k_out2, k_tgt2, k_r12, k_r22 = jax.random.split(jax.random.PRNGKey(1), 4)
    batch2, feat2, experts2 = 72, 128, 8          # TB=16 -> 5 tiles, NC=2, NT=3, tail=8
    outputs2 = jax.random.normal(k_out2, (batch2, feat2), dtype=jnp.float32)
    targets2 = jax.random.normal(k_tgt2, (batch2, feat2), dtype=jnp.float32)
    router_12 = jax.nn.softmax(jax.random.normal(k_r12, (batch2, experts2)), axis=-1)
    router_22 = jax.nn.softmax(jax.random.normal(k_r22, (batch2, experts2)), axis=-1)

    loss2 = importance_regulated_loss(outputs2, targets2, router_12, router_22,
                                      w_1=0.3, w_2=0.05, max_batch_tile=16)
    loss2 = jax.block_until_ready(loss2)
    ref2 = _reference(outputs2, targets2, router_12, router_22, w_1=0.3, w_2=0.05)
    assert jnp.allclose(loss2, ref2, rtol=1e-5, atol=1e-5), (loss2, ref2)

    print("KERNEL_OK")
</pallas_src>

<mosaic_0001>
module attributes {stable_mosaic.version = 11 : i64} {
  func.func @kernel(%arg0: i32, %arg1: i32, %arg2: memref<8x32xf32, #tpu.memory_space<vmem>>, %arg3: memref<8x32xf32, #tpu.memory_space<vmem>>, %arg4: memref<8x8xf32, #tpu.memory_space<vmem>>, %arg5: memref<8x8xf32, #tpu.memory_space<vmem>>, %arg6: memref<1x1x1xf32, #tpu.memory_space<vmem>>, %arg7: memref<1x1x8xf32, #tpu.memory_space<vmem>>, %arg8: memref<1x1x8xf32, #tpu.memory_space<vmem>>, %arg9: memref<1x1xf32, #tpu.memory_space<vmem>>, %arg10: memref<1x8xf32, #tpu.memory_space<vmem>>, %arg11: memref<1x8xf32, #tpu.memory_space<vmem>>) attributes {dimension_semantics = [#tpu.dimension_semantics<parallel>, #tpu.dimension_semantics<arbitrary>], iteration_bounds = array<i64: 1, 1>, scalar_prefetch = 0 : i64, scratch_operands = 3 : i64, tpu.core_type = #tpu.core_type<tc>, window_params = [{transform_indices = @transform_0, window_bounds = array<i64: 8, 32>}, {transform_indices = @transform_1, window_bounds = array<i64: 8, 32>}, {transform_indices = @transform_2, window_bounds = array<i64: 8, 8>}, {transform_indices = @transform_3, window_bounds = array<i64: 8, 8>}, {transform_indices = @transform_4, window_bounds = array<i64: 1, 1, 1>}, {transform_indices = @transform_5, window_bounds = array<i64: 1, 1, 8>}, {transform_indices = @transform_6, window_bounds = array<i64: 1, 1, 8>}]} {
    %c1_i32 = arith.constant 1 : i32
    %0 = arith.muli %arg0, %c1_i32 : i32
    %1 = arith.addi %0, %arg1 : i32
    %c0_i32 = arith.constant 0 : i32
    %2 = arith.cmpi eq, %arg1, %c0_i32 : i32
    %3 = arith.extui %2 : i1 to i32
    %c0_i32_0 = arith.constant 0 : i32
    %4 = arith.cmpi ne, %3, %c0_i32_0 : i32
    scf.if %4 {
      %cst = arith.constant 0.000000e+00 : f32
      %11 = vector.broadcast %cst : f32 to vector<1x1xf32>
      %c0 = arith.constant 0 : index
      %c0_5 = arith.constant 0 : index
      %12 = vector.load %arg9[%c0, %c0_5] : memref<1x1xf32, #tpu.memory_space<vmem>>, vector<1x1xf32>
      tpu.vector_store %arg9[%c0, %c0_5], %11 {strides = array<i32>} : memref<1x1xf32, #tpu.memory_space<vmem>>, vector<1x1xf32>,
      %cst_6 = arith.constant 0.000000e+00 : f32
      %13 = vector.broadcast %cst_6 : f32 to vector<1x8xf32>
      %c0_7 = arith.constant 0 : index
      %c0_8 = arith.constant 0 : index
      %14 = vector.load %arg10[%c0_7, %c0_8] : memref<1x8xf32, #tpu.memory_space<vmem>>, vector<1x8xf32>
      tpu.vector_store %arg10[%c0_7, %c0_8], %13 {strides = array<i32>} : memref<1x8xf32, #tpu.memory_space<vmem>>, vector<1x8xf32>,
      %cst_9 = arith.constant 0.000000e+00 : f32
      %15 = vector.broadcast %cst_9 : f32 to vector<1x8xf32>
      %c0_10 = arith.constant 0 : index
      %c0_11 = arith.constant 0 : index
      %16 = vector.load %arg11[%c0_10, %c0_11] : memref<1x8xf32, #tpu.memory_space<vmem>>, vector<1x8xf32>
      tpu.vector_store %arg11[%c0_10, %c0_11], %15 {strides = array<i32>} : memref<1x8xf32, #tpu.memory_space<vmem>>, vector<1x8xf32>,
    } else {
    }
    %c1_i32_1 = arith.constant 1 : i32
    %5 = arith.cmpi slt, %1, %c1_i32_1 : i32
    %6 = arith.extui %5 : i1 to i32
    %c0_i32_2 = arith.constant 0 : i32
    %7 = arith.cmpi ne, %6, %c0_i32_2 : i32
    scf.if %7 {
      %c0 = arith.constant 0 : index
      %c0_5 = arith.constant 0 : index
      %11 = vector.load %arg2[%c0, %c0_5] : memref<8x32xf32, #tpu.memory_space<vmem>>, vector<8x32xf32>
      %c0_6 = arith.constant 0 : index
      %c0_7 = arith.constant 0 : index
      %12 = vector.load %arg3[%c0_6, %c0_7] : memref<8x32xf32, #tpu.memory_space<vmem>>, vector<8x32xf32>
      %c0_8 = arith.constant 0 : index
      %c0_9 = arith.constant 0 : index
      %13 = vector.load %arg4[%c0_8, %c0_9] : memref<8x8xf32, #tpu.memory_space<vmem>>, vector<8x8xf32>
      %c0_10 = arith.constant 0 : index
      %c0_11 = arith.constant 0 : index
      %14 = vector.load %arg5[%c0_10, %c0_11] : memref<8x8xf32, #tpu.memory_space<vmem>>, vector<8x8xf32>
      %15 = arith.subf %11, %12 : vector<8x32xf32>
      %c0_12 = arith.constant 0 : index
      %c0_13 = arith.constant 0 : index
      %16 = vector.load %arg9[%c0_12, %c0_13] : memref<1x1xf32, #tpu.memory_space<vmem>>, vector<1x1xf32>
      %17 = arith.mulf %15, %15 : vector<8x32xf32>
      %18 = vector.shape_cast %17 : vector<8x32xf32> to vector<1x8x32xf32>
      %cst = arith.constant dense<0.000000e+00> : vector<1xf32>
      %19 = vector.multi_reduction <add>, %18, %cst [1, 2] : vector<1x8x32xf32> to vector<1xf32>
      %20 = vector.shape_cast %19 : vector<1xf32> to vector<1x1x1xf32>
      %21 = vector.extract %20[0, 0, 0] : f32 from vector<1x1x1xf32>
      %22 = vector.broadcast %21 : f32 to vector<1x1xf32>
      %23 = arith.addf %16, %22 : vector<1x1xf32>
      %c0_14 = arith.constant 0 : index
      %c0_15 = arith.constant 0 : index
      %24 = vector.load %arg9[%c0_14, %c0_15] : memref<1x1xf32, #tpu.memory_space<vmem>>, vector<1x1xf32>
      tpu.vector_store %arg9[%c0_14, %c0_15], %23 {strides = array<i32>} : memref<1x1xf32, #tpu.memory_space<vmem>>, vector<1x1xf32>,
      %c0_16 = arith.constant 0 : index
      %c0_17 = arith.constant 0 : index
      %25 = vector.load %arg10[%c0_16, %c0_17] : memref<1x8xf32, #tpu.memory_space<vmem>>, vector<1x8xf32>
      %cst_18 = arith.constant dense<0.000000e+00> : vector<8xf32>
      %26 = vector.multi_reduction <add>, %13, %cst_18 [0] : vector<8x8xf32> to vector<8xf32>
      %27 = vector.shape_cast %26 : vector<8xf32> to vector<1x8xf32>
      %28 = arith.addf %25, %27 : vector<1x8xf32>
      %c0_19 = arith.constant 0 : index
      %c0_20 = arith.constant 0 : index
      %29 = vector.load %arg10[%c0_19, %c0_20] : memref<1x8xf32, #tpu.memory_space<vmem>>, vector<1x8xf32>
      tpu.vector_store %arg10[%c0_19, %c0_20], %28 {strides = array<i32>} : memref<1x8xf32, #tpu.memory_space<vmem>>, vector<1x8xf32>,
      %c0_21 = arith.constant 0 : index
      %c0_22 = arith.constant 0 : index
      %30 = vector.load %arg11[%c0_21, %c0_22] : memref<1x8xf32, #tpu.memory_space<vmem>>, vector<1x8xf32>
      %cst_23 = arith.constant dense<0.000000e+00> : vector<8xf32>
      %31 = vector.multi_reduction <add>, %14, %cst_23 [0] : vector<8x8xf32> to vector<8xf32>
      %32 = vector.shape_cast %31 : vector<8xf32> to vector<1x8xf32>
      %33 = arith.addf %30, %32 : vector<1x8xf32>
      %c0_24 = arith.constant 0 : index
      %c0_25 = arith.constant 0 : index
      %34 = vector.load %arg11[%c0_24, %c0_25] : memref<1x8xf32, #tpu.memory_space<vmem>>, vector<1x8xf32>
      tpu.vector_store %arg11[%c0_24, %c0_25], %33 {strides = array<i32>} : memref<1x8xf32, #tpu.memory_space<vmem>>, vector<1x8xf32>,
    } else {
    }
    %c0_i32_3 = arith.constant 0 : i32
    %8 = arith.cmpi eq, %arg1, %c0_i32_3 : i32
    %9 = arith.extui %8 : i1 to i32
    %c0_i32_4 = arith.constant 0 : i32
    %10 = arith.cmpi ne, %9, %c0_i32_4 : i32
    scf.if %10 {
      %c0 = arith.constant 0 : index
      %c0_5 = arith.constant 0 : index
      %11 = vector.load %arg9[%c0, %c0_5] : memref<1x1xf32, #tpu.memory_space<vmem>>, vector<1x1xf32>
      %c0_6 = arith.constant 0 : index
      %c0_7 = arith.constant 0 : index
      %c0_8 = arith.constant 0 : index
      %12 = vector.load %arg6[%c0_6, %c0_7, %c0_8] : memref<1x1x1xf32, #tpu.memory_space<vmem>>, vector<1x1x1xf32>
      %13 = vector.shape_cast %12 : vector<1x1x1xf32> to vector<1x1xf32>
      %14 = vector.shape_cast %11 : vector<1x1xf32> to vector<1x1x1xf32>
      tpu.vector_store %arg6[%c0_6, %c0_7, %c0_8], %14 {strides = array<i32>} : memref<1x1x1xf32, #tpu.memory_space<vmem>>, vector<1x1x1xf32>,
      %c0_9 = arith.constant 0 : index
      %c0_10 = arith.constant 0 : index
      %15 = vector.load %arg10[%c0_9, %c0_10] : memref<1x8xf32, #tpu.memory_space<vmem>>, vector<1x8xf32>
      %c0_11 = arith.constant 0 : index
      %c0_12 = arith.constant 0 : index
      %c0_13 = arith.constant 0 : index
      %16 = vector.load %arg7[%c0_11, %c0_12, %c0_13] : memref<1x1x8xf32, #tpu.memory_space<vmem>>, vector<1x1x8xf32>
      %17 = vector.shape_cast %16 : vector<1x1x8xf32> to vector<1x8xf32>
      %18 = vector.shape_cast %15 : vector<1x8xf32> to vector<1x1x8xf32>
      tpu.vector_store %arg7[%c0_11, %c0_12, %c0_13], %18 {strides = array<i32>} : memref<1x1x8xf32, #tpu.memory_space<vmem>>, vector<1x1x8xf32>,
      %c0_14 = arith.constant 0 : index
      %c0_15 = arith.constant 0 : index
      %19 = vector.load %arg11[%c0_14, %c0_15] : memref<1x8xf32, #tpu.memory_space<vmem>>, vector<1x8xf32>
      %c0_16 = arith.constant 0 : index
      %c0_17 = arith.constant 0 : index
      %c0_18 = arith.constant 0 : index
      %20 = vector.load %arg8[%c0_16, %c0_17, %c0_18] : memref<1x1x8xf32, #tpu.memory_space<vmem>>, vector<1x1x8xf32>
      %21 = vector.shape_cast %20 : vector<1x1x8xf32> to vector<1x8xf32>
      %22 = vector.shape_cast %19 : vector<1x8xf32> to vector<1x1x8xf32>
      tpu.vector_store %arg8[%c0_16, %c0_17, %c0_18], %22 {strides = array<i32>} : memref<1x1x8xf32, #tpu.memory_space<vmem>>, vector<1x1x8xf32>,
    } else {
    }
    return
  }
  func.func @transform_0(%arg0: i32, %arg1: i32) -> (i32, i32) {
    %c1_i32 = arith.constant 1 : i32
    %0 = arith.muli %arg0, %c1_i32 : i32
    %1 = arith.addi %0, %arg1 : i32
    %c0_i32 = arith.constant 0 : i32
    %2 = arith.minsi %1, %c0_i32 : i32
    %c0_i32_0 = arith.constant 0 : i32
    %c0_i32_1 = arith.constant 0 : i32
    return %2, %c0_i32_0 : i32, i32
  }
  func.func @transform_1(%arg0: i32, %arg1: i32) -> (i32, i32) {
    %c1_i32 = arith.constant 1 : i32
    %0 = arith.muli %arg0, %c1_i32 : i32
    %1 = arith.addi %0, %arg1 : i32
    %c0_i32 = arith.constant 0 : i32
    %2 = arith.minsi %1, %c0_i32 : i32
    %c0_i32_0 = arith.constant 0 : i32
    %c0_i32_1 = arith.constant 0 : i32
    return %2, %c0_i32_0 : i32, i32
  }
  func.func @transform_2(%arg0: i32, %arg1: i32) -> (i32, i32) {
    %c1_i32 = arith.constant 1 : i32
    %0 = arith.muli %arg0, %c1_i32 : i32
    %1 = arith.addi %0, %arg1 : i32
    %c0_i32 = arith.constant 0 : i32
    %2 = arith.minsi %1, %c0_i32 : i32
    %c0_i32_0 = arith.constant 0 : i32
    %c0_i32_1 = arith.constant 0 : i32
    return %2, %c0_i32_0 : i32, i32
  }
  func.func @transform_3(%arg0: i32, %arg1: i32) -> (i32, i32) {
    %c1_i32 = arith.constant 1 : i32
    %0 = arith.muli %arg0, %c1_i32 : i32
    %1 = arith.addi %0, %arg1 : i32
    %c0_i32 = arith.constant 0 : i32
    %2 = arith.minsi %1, %c0_i32 : i32
    %c0_i32_0 = arith.constant 0 : i32
    %c0_i32_1 = arith.constant 0 : i32
    return %2, %c0_i32_0 : i32, i32
  }
  func.func @transform_4(%arg0: i32, %arg1: i32) -> (i32, i32, i32) {
    %c0_i32 = arith.constant 0 : i32
    %c0_i32_0 = arith.constant 0 : i32
    %c0_i32_1 = arith.constant 0 : i32
    return %arg0, %c0_i32, %c0_i32_0 : i32, i32, i32
  }
  func.func @transform_5(%arg0: i32, %arg1: i32) -> (i32, i32, i32) {
    %c0_i32 = arith.constant 0 : i32
    %c0_i32_0 = arith.constant 0 : i32
    %c0_i32_1 = arith.constant 0 : i32
    return %arg0, %c0_i32, %c0_i32_0 : i32, i32, i32
  }
  func.func @transform_6(%arg0: i32, %arg1: i32) -> (i32, i32, i32) {
    %c0_i32 = arith.constant 0 : i32
    %c0_i32_0 = arith.constant 0 : i32
    %c0_i32_1 = arith.constant 0 : i32
    return %arg0, %c0_i32, %c0_i32_0 : i32, i32, i32
  }
}

</mosaic_0001>

<llo_original>
// kernel: tpu_custom_call.1
$region0: #{tpu_custom_call.1}
  #allocation0 [shape = 'u32[]', space=smem, size = 0x4, offset = 0x4, fixed_abs, tag = 'smem constant byte address 0x4 - core index']
  #allocation1 [shape = 'u32[144,128]{1,0:T(1,128)}', space=vmem, size = 0x12000, scoped, tag = 'internal scratch']
  #allocation2 [shape = 'f32[1,1]{1,0:T(1,128)}', space=vmem, size = 0x200, scoped, tag = 'scratch operand']
  #allocation3 [shape = 'f32[1,8]{1,0:T(1,128)}', space=vmem, size = 0x200, scoped, tag = 'scratch operand']
  #allocation4 [shape = 'f32[1,8]{1,0:T(1,128)}', space=vmem, size = 0x200, scoped, tag = 'scratch operand']
  %s0 = inlined_call_operand.hbm [shape: f32[8,32], index: 0, kind: input, shape index: {}]
  %s1 = inlined_call_operand.hbm [shape: f32[8,32], index: 1, kind: input, shape index: {}]
  %s2 = inlined_call_operand.hbm [shape: f32[8,8], index: 2, kind: input, shape index: {}]
  %s3 = inlined_call_operand.hbm [shape: f32[8,8], index: 3, kind: input, shape index: {}]
  %s4 = inlined_call_operand.hbm [shape: f32[1,1,1], index: 4, kind: output, shape index: {0}]
  %s5 = inlined_call_operand.hbm [shape: f32[1,1,8], index: 5, kind: output, shape index: {1}]
  %s6 = inlined_call_operand.hbm [shape: f32[1,1,8], index: 6, kind: output, shape index: {2}]
  %7 = xla_tuple %s4, %s5, %s6
  %s8 = sld [smem:[#allocation0]]
  $region70: #{tpu_custom_call.1} parent=0
    _
  %s10 = ssub.s32 1, %s8
  %s11 = scalar_select 0, %s10, %s8
  $region1: #{tpu_custom_call.1} parent=0
    #allocation5 [shape = 'u8[4096]{0}', space=vmem, size = 0x1000, scoped, tag = 'input window, operand 0, single buffered']
    #allocation6 [shape = 's32[1]{0}', space=sflag, size = 0x4, scoped, tag = 'scoped memory for tpu_custom_call.1']
    #allocation7 [shape = 's32[1]{0}', space=sflag, size = 0x4, scoped, tag = 'scoped memory for tpu_custom_call.1']
    #allocation8 [shape = 'u8[4096]{0}', space=vmem, size = 0x1000, scoped, tag = 'input window, operand 1, single buffered']
    #allocation9 [shape = 's32[1]{0}', space=sflag, size = 0x4, scoped, tag = 'scoped memory for tpu_custom_call.1']
    #allocation10 [shape = 'u8[4096]{0}', space=vmem, size = 0x1000, scoped, tag = 'input window, operand 2, single buffered']
    #allocation11 [shape = 'u8[4096]{0}', space=vmem, size = 0x1000, scoped, tag = 'input window, operand 3, single buffered']
    #allocation12 [shape = 's32[1]{0}', space=sflag, size = 0x4, scoped, tag = 'scoped memory for tpu_custom_call.1']
    #allocation13 [shape = 'u8[512]{0}', space=vmem, size = 0x400, scoped, tag = 'output window, operand 0, single buffered']
    #allocation14 [shape = 'u8[512]{0}', space=vmem, size = 0x400, scoped, tag = 'output window, operand 1, single buffered']
    #allocation15 [shape = 's32[1]{0}', space=sflag, size = 0x4, scoped, tag = 'scoped memory for tpu_custom_call.1']
    #allocation16 [shape = 'u8[512]{0}', space=vmem, size = 0x400, scoped, tag = 'output window, operand 2, single buffered']
    %12 = vsyncpa [#allocation6], 0
    %13 = vsyncpa [#allocation9], 0
    %14 = vsyncpa [#allocation12], 0
    %15 = vsyncpa [#allocation7], 0
    %16 = vsyncpa [#allocation15], 0
    // Predicated region
    $region2: #{tpu_custom_call.1} parent=1 // pred_check
      _
    $region3: #{tpu_custom_call.1} parent=1 // pred_check_branch
      %18 = sbr.rel (0) target = $region5
    $region4: #{tpu_custom_call.1} parent=1 // pred_region
      %s19 = sadd.s32 0, 0
      %p20 = scmp.lt.s32.totalorder %s19, 0
      %s21 = scalar_select %p20, %s19, 0
      %s23 = ssub.s32 128, 128
      %24 = vsyncadd [#allocation6], %s23
      %s25 = smul.addr %s21, 128
      %s26 = scalar_lea.hbm %s0, %s25
      %s28 = sshll.u32 [#allocation5], 4
      %s29 = int_to_ptr.vmem [resolvable:$true] %s28
      %31 = dma.hbm_to_vmem [thread:$0]  %s26, 128, %s29, [#allocation6]
    $region5: #{tpu_custom_call.1} parent=1 // pred_fallthru
      _
    // Predicated region
    $region6: #{tpu_custom_call.1} parent=1 // pred_check
      _
    $region7: #{tpu_custom_call.1} parent=1 // pred_check_branch
      %33 = sbr.rel (0) target = $region9
    $region8: #{tpu_custom_call.1} parent=1 // pred_region
      %s34 = sadd.s32 0, 0
      %p35 = scmp.lt.s32.totalorder %s34, 0
      %s36 = scalar_select %p35, %s34, 0
      %s38 = ssub.s32 128, 128
      %39 = vsyncadd [#allocation9], %s38
      %s40 = smul.addr %s36, 128
      %s41 = scalar_lea.hbm %s1, %s40
      %s43 = sshll.u32 [#allocation8], 4
      %s44 = int_to_ptr.vmem [resolvable:$true] %s43
      %46 = dma.hbm_to_vmem [thread:$0]  %s41, 128, %s44, [#allocation9]
    $region9: #{tpu_custom_call.1} parent=1 // pred_fallthru
      _
    // Predicated region
    $region10: #{tpu_custom_call.1} parent=1 // pred_check
      _
    $region11: #{tpu_custom_call.1} parent=1 // pred_check_branch
      %48 = sbr.rel (0) target = $region13
    $region12: #{tpu_custom_call.1} parent=1 // pred_region
      %s49 = sadd.s32 0, 0
      %p50 = scmp.lt.s32.totalorder %s49, 0
      %s51 = scalar_select %p50, %s49, 0
      %s53 = ssub.s32 128, 128
      %54 = vsyncadd [#allocation9], %s53
      %s55 = smul.addr %s51, 128
      %s56 = scalar_lea.hbm %s2, %s55
      %s58 = sshll.u32 [#allocation10], 4
      %s59 = int_to_ptr.vmem [resolvable:$true] %s58
      %61 = dma.hbm_to_vmem [thread:$0]  %s56, 128, %s59, [#allocation9]
    $region13: #{tpu_custom_call.1} parent=1 // pred_fallthru
      _
    // Predicated region
    $region14: #{tpu_custom_call.1} parent=1 // pred_check
      _
    $region15: #{tpu_custom_call.1} parent=1 // pred_check_branch
      %63 = sbr.rel (0) target = $region17
    $region16: #{tpu_custom_call.1} parent=1 // pred_region
      %s64 = sadd.s32 0, 0
      %p65 = scmp.lt.s32.totalorder %s64, 0
      %s66 = scalar_select %p65, %s64, 0
      %s68 = ssub.s32 128, 128
      %69 = vsyncadd [#allocation12], %s68
      %s70 = smul.addr %s66, 128
      %s71 = scalar_lea.hbm %s3, %s70
      %s73 = sshll.u32 [#allocation11], 4
      %s74 = int_to_ptr.vmem [resolvable:$true] %s73
      %76 = dma.hbm_to_vmem [thread:$0]  %s71, 128, %s74, [#allocation12]
    $region17: #{tpu_custom_call.1} parent=1 // pred_fallthru
      _
    // Predicated region
    $region18: #{tpu_custom_call.1} parent=1 // pred_check
      _
    $region19: #{tpu_custom_call.1} parent=1 // pred_check_branch
      %78 = sbr.rel (0) target = $region21
    $region20: #{tpu_custom_call.1} parent=1 // pred_region
      %79 = dma.done [#allocation6], 128
    $region21: #{tpu_custom_call.1} parent=1 // pred_fallthru
      _
    // Predicated region
    $region22: #{tpu_custom_call.1} parent=1 // pred_check
      _
    $region23: #{tpu_custom_call.1} parent=1 // pred_check_branch
      %81 = sbr.rel (0) target = $region25
    $region24: #{tpu_custom_call.1} parent=1 // pred_region
      %82 = dma.done [#allocation9], 128
    $region25: #{tpu_custom_call.1} parent=1 // pred_fallthru
      _
    // Predicated region
    $region26: #{tpu_custom_call.1} parent=1 // pred_check
      _
    $region27: #{tpu_custom_call.1} parent=1 // pred_check_branch
      %84 = sbr.rel (0) target = $region29
    $region28: #{tpu_custom_call.1} parent=1 // pred_region
      %85 = dma.done [#allocation9], 128
    $region29: #{tpu_custom_call.1} parent=1 // pred_fallthru
      _
    // Predicated region
    $region30: #{tpu_custom_call.1} parent=1 // pred_check
      _
    $region31: #{tpu_custom_call.1} parent=1 // pred_check_branch
      %87 = sbr.rel (0) target = $region33
    $region32: #{tpu_custom_call.1} parent=1 // pred_region
      %88 = dma.done [#allocation12], 128
    $region33: #{tpu_custom_call.1} parent=1 // pred_fallthru
      _
    %s89 = sadd.s32 0, 0
    %p90 = scmp.lt.s32.totalorder %s89, 0
    %s91 = scalar_select %p90, %s89, 0
    %s92 = sadd.s32 0, 0
    %p93 = scmp.lt.s32.totalorder %s92, 0
    %s94 = scalar_select %p93, %s92, 0
    %s95 = sadd.s32 0, 0
    %p96 = scmp.lt.s32.totalorder %s95, 0
    %s97 = scalar_select %p96, %s95, 0
    %s98 = sadd.s32 0, 0
    %p99 = scmp.lt.s32.totalorder %s98, 0
    %s100 = scalar_select %p99, %s98, 0
    %s101 = sadd.s32 0, 0
    %p102 = scmp.eq.s32.totalorder 0, 0
    // Predicated region
    $region34: #{tpu_custom_call.1} parent=1 // pred_check
      %p103 = pneg %p102
    $region35: #{tpu_custom_call.1} parent=1 // pred_check_branch
      %105 = sbr.rel (%p103) target = $region37
    $region36: #{tpu_custom_call.1} parent=1 // pred_region
      %vm106 = vcmask 0
      %107 = vst.msk [vmem:[#allocation2] sm:$0x1] %vm106, 0.0
      %vm108 = vcmask 57344
      %109 = vst.msk [vmem:[#allocation3] sm:$0x1] %vm108, 0.0
      %110 = vst.msk [vmem:[#allocation4] sm:$0x1] %vm108, 0.0
    $region37: #{tpu_custom_call.1} parent=1 // pred_fallthru
      _
    %p111 = scmp.lt.s32.totalorder %s101, 1
    // Predicated region
    $region38: #{tpu_custom_call.1} parent=1 // pred_check
      %p112 = pneg %p111
    $region39: #{tpu_custom_call.1} parent=1 // pred_check_branch
      %114 = sbr.rel (%p112) target = $region41
    $region40: #{tpu_custom_call.1} parent=1 // pred_region
      %v115 = vld [vmem:[#allocation5] sm:$0xff]
      %v116 = vld [vmem:[#allocation8] sm:$0xff]
      %v117 = vld [vmem:[#allocation10] sm:$0xff]
      %v118 = vld [vmem:[#allocation11] sm:$0xff]
      %v119 = vsub.f32 %v115, %v116
      %v120 = vld [vmem:[#allocation2] sm:$0x1]
      %v121 = vmul.f32 %v119, %v119
      %vm122 = vcmask 261120
      %v123 = vsel %vm122, %v121, 0.0
      %124 = vadd.xlane.f32.xlu0 %v123
      %v125 = vpop.xlane.xlu0 %124
      %v126 = vrot.slane %v125, 4
      %v127 = vadd.f32 %v125, %v126
      %v128 = vrot.slane %v127, 2
      %v129 = vadd.f32 %v127, %v128
      %v130 = vrot.slane %v129, 1
      %v131 = vadd.f32 %v129, %v130
      %s132 = vtos %v131
      %v133 = vstv %s132
      %v134 = vadd.f32 %v120, %v133
      %vm135 = vcmask 0
      %136 = vst.msk [vmem:[#allocation2] sm:$0x1] %vm135, %v134
      %v137 = vld [vmem:[#allocation3] sm:$0x1]
      %vm138 = vcmask 64512
      %v139 = vsel %vm138, %v117, 0.0
      %v140 = vrot.slane %v139, 4
      %v141 = vadd.f32 %v139, %v140
      %v142 = vrot.slane %v141, 2
      %v143 = vadd.f32 %v141, %v142
      %v144 = vrot.slane %v143, 1
      %v145 = vadd.f32 %v143, %v144
      %v146 = vadd.f32 %v137, %v145
      %vm147 = vcmask 57344
      %148 = vst.msk [vmem:[#allocation3] sm:$0x1] %vm147, %v146
      %v149 = vld [vmem:[#allocation4] sm:$0x1]
      %v150 = vsel %vm138, %v118, 0.0
      %v151 = vrot.slane %v150, 4
      %v152 = vadd.f32 %v150, %v151
      %v153 = vrot.slane %v152, 2
      %v154 = vadd.f32 %v152, %v153
      %v155 = vrot.slane %v154, 1
      %v156 = vadd.f32 %v154, %v155
      %v157 = vadd.f32 %v149, %v156
      %158 = vst.msk [vmem:[#allocation4] sm:$0x1] %vm147, %v157
    $region41: #{tpu_custom_call.1} parent=1 // pred_fallthru
      _
    // Predicated region
    $region42: #{tpu_custom_call.1} parent=1 // pred_check
      %p159 = pneg %p102
    $region43: #{tpu_custom_call.1} parent=1 // pred_check_branch
      %161 = sbr.rel (%p159) target = $region45
    $region44: #{tpu_custom_call.1} parent=1 // pred_region
      %v162 = vld [vmem:[#allocation2] sm:$0x1]
      %vm163 = vcmask 0
      %164 = vst.msk [vmem:[#allocation13] sm:$0x1] %vm163, %v162
      %v165 = vld [vmem:[#allocation3] sm:$0x1]
      %vm166 = vcmask 57344
      %167 = vst.msk [vmem:[#allocation14] sm:$0x1] %vm166, %v165
      %v168 = vld [vmem:[#allocation4] sm:$0x1]
      %169 = vst.msk [vmem:[#allocation16] sm:$0x1] %vm166, %v168
    $region45: #{tpu_custom_call.1} parent=1 // pred_fallthru
      _
    // Predicated region
    $region46: #{tpu_custom_call.1} parent=1 // pred_check
      _
    $region47: #{tpu_custom_call.1} parent=1 // pred_check_branch
      %171 = sbr.rel (0) target = $region49
    $region48: #{tpu_custom_call.1} parent=1 // pred_region
      %s173 = ssub.s32 16, 16
      %174 = vsyncadd [#allocation7], %s173
      %s176 = sshll.u32 [#allocation13], 4
      %s177 = int_to_ptr.vmem [resolvable:$true] %s176
      %179 = dma.vmem_to_hbm [thread:$0]  %s177, 16, %s4, [#allocation7]
    $region49: #{tpu_custom_call.1} parent=1 // pred_fallthru
      _
    // Predicated region
    $region50: #{tpu_custom_call.1} parent=1 // pred_check
      _
    $region51: #{tpu_custom_call.1} parent=1 // pred_check_branch
      %181 = sbr.rel (0) target = $region53
    $region52: #{tpu_custom_call.1} parent=1 // pred_region
      %s183 = ssub.s32 16, 16
      %184 = vsyncadd [#allocation15], %s183
      %s186 = sshll.u32 [#allocation14], 4
      %s187 = int_to_ptr.vmem [resolvable:$true] %s186
      %189 = dma.vmem_to_hbm [thread:$0]  %s187, 16, %s5, [#allocation15]
    $region53: #{tpu_custom_call.1} parent=1 // pred_fallthru
      _
    // Predicated region
    $region54: #{tpu_custom_call.1} parent=1 // pred_check
      _
    $region55: #{tpu_custom_call.1} parent=1 // pred_check_branch
      %191 = sbr.rel (0) target = $region57
    $region56: #{tpu_custom_call.1} parent=1 // pred_region
      %s193 = ssub.s32 16, 16
      %194 = vsyncadd [#allocation15], %s193
      %s196 = sshll.u32 [#allocation16], 4
      %s197 = int_to_ptr.vmem [resolvable:$true] %s196
      %199 = dma.vmem_to_hbm [thread:$0]  %s197, 16, %s6, [#allocation15]
    $region57: #{tpu_custom_call.1} parent=1 // pred_fallthru
      _
    // Predicated region
    $region58: #{tpu_custom_call.1} parent=1 // pred_check
      _
    $region59: #{tpu_custom_call.1} parent=1 // pred_check_branch
      %201 = sbr.rel (0) target = $region61
    $region60: #{tpu_custom_call.1} parent=1 // pred_region
      %202 = dma.done [#allocation7], 16
    $region61: #{tpu_custom_call.1} parent=1 // pred_fallthru
      _
    // Predicated region
    $region62: #{tpu_custom_call.1} parent=1 // pred_check
      _
    $region63: #{tpu_custom_call.1} parent=1 // pred_check_branch
      %204 = sbr.rel (0) target = $region65
    $region64: #{tpu_custom_call.1} parent=1 // pred_region
      %205 = dma.done [#allocation15], 16
    $region65: #{tpu_custom_call.1} parent=1 // pred_fallthru
      _
    // Predicated region
    $region66: #{tpu_custom_call.1} parent=1 // pred_check
      _
    $region67: #{tpu_custom_call.1} parent=1 // pred_check_branch
      %207 = sbr.rel (0) target = $region69
    $region68: #{tpu_custom_call.1} parent=1 // pred_region
      %208 = dma.done [#allocation15], 16
    $region69: #{tpu_custom_call.1} parent=1 // pred_fallthru
      _
    %209 = vsyncpa [#allocation6], 1
    %210 = vsyncpa [#allocation9], 1
    %211 = vsyncpa [#allocation12], 1
    %212 = vsyncpa [#allocation7], 1
    %213 = vsyncpa [#allocation15], 1

</llo_original>
